<compile_context>
chip_gen: v5e
topology: v5e:2x2
jax: 0.10.0
libtpu: 0.0.40
codegen_flags: <defaults>
</compile_context>

<pallas_src>
import functools

import jax
import jax.numpy as jnp
from jax import lax
from jax.experimental import pallas as pl
from jax.experimental.pallas import tpu as pltpu


def _expanding_block_kernel(x_ref, w_ref, b_ref, o_ref, *, width, hw, cin, cout,
                            use_bn, negative_slope, eps):
    # x_ref: (1, Cin, HWp)    flattened input, zero-padded by >= W+1 at the end
    # w_ref: (4, 4*Cout, Cin) per-shift weight blocks (q = which shifted input)
    # b_ref: (4*Cout, 1)      bias replicated per output parity
    # o_ref: (1, 4*Cout, HW)  rows ordered (2*ph + pw)*Cout + c
    xp = x_ref[0]                                   # (Cin, HWp)

    # Shifted taps as plain static lane slices (zero tail pad covers row overflow).
    x00 = xp[:, 0:hw]                               # x[a, b]
    x01 = xp[:, 1:hw + 1]                           # x[a, b+1]   (fix b == W-1 below)
    x10 = xp[:, width:hw + width]                   # x[a+1, b]
    x11 = xp[:, width + 1:hw + width + 1]           # x[a+1, b+1] (fix b == W-1 below)

    col = lax.broadcasted_iota(jnp.int32, (cin, hw), 1) % width
    keep = col != (width - 1)
    x01 = jnp.where(keep, x01, 0.0)
    x11 = jnp.where(keep, x11, 0.0)

    # One small GEMM per shifted input: (4*Cout, Cin) @ (Cin, HW), accumulated.
    y = jnp.dot(w_ref[0], x00, preferred_element_type=jnp.float32)
    y = y + jnp.dot(w_ref[1], x01, preferred_element_type=jnp.float32)
    y = y + jnp.dot(w_ref[2], x10, preferred_element_type=jnp.float32)
    y = y + jnp.dot(w_ref[3], x11, preferred_element_type=jnp.float32)
    y = y + b_ref[...]                              # (4*Cout, HW)

    if use_bn:
        # InstanceNorm2d (affine=False): per-(sample, channel) stats over all
        # Ho*Wo = 4*HW output pixels of that channel (its 4 parity rows).
        inv_n = 1.0 / (4.0 * hw)
        rs = jnp.sum(y, axis=1, keepdims=True)      # (4*Cout, 1)
        mean_c = (rs[0:cout] + rs[cout:2 * cout] +
                  rs[2 * cout:3 * cout] + rs[3 * cout:4 * cout]) * inv_n
        mean_b = jnp.concatenate([mean_c, mean_c, mean_c, mean_c], axis=0)
        yc = y - mean_b
        rs2 = jnp.sum(yc * yc, axis=1, keepdims=True)
        var_c = (rs2[0:cout] + rs2[cout:2 * cout] +
                 rs2[2 * cout:3 * cout] + rs2[3 * cout:4 * cout]) * inv_n
        var_b = jnp.concatenate([var_c, var_c, var_c, var_c], axis=0)
        y = yc * lax.rsqrt(var_b + eps)

    # LeakyReLU (default negative_slope = 0.01)
    y = jnp.where(y >= 0, y, negative_slope * y)
    o_ref[0] = y.astype(o_ref.dtype)


def expanding_block_forward(x_nchw, weight, bias, *, use_bn=True,
                            negative_slope=0.01, eps=1e-5):
    """Forward pass of ExpandingBlock.

    x_nchw: (N, Cin, H, W)
    weight: (Cin, Cout, 3, 3)   (PyTorch ConvTranspose2d layout, Cout = Cin // 2)
    bias:   (Cout,)
    returns (N, Cout, 2H, 2W)
    """
    N, Cin, H, W = x_nchw.shape
    Cout = weight.shape[1]
    HW = H * W
    dt = x_nchw.dtype

    # Flatten spatial (free reshape) and append >= W+1 zeros so the shifted taps
    # can be read as static lane slices inside the kernel.
    pad = ((W + 1 + 127) // 128) * 128
    x_flat = jnp.pad(x_nchw.reshape(N, Cin, HW), ((0, 0), (0, 0), (0, pad)))
    HWp = HW + pad

    # Per-shift weight blocks for the s=2 transposed-conv parity decomposition.
    # Output parity p = 2*ph + pw; shifted input q: 0=x[a,b], 1=x[a,b+1],
    # 2=x[a+1,b], 3=x[a+1,b+1].  Effective regular-conv weight is
    # w'[kh,kw] = w[..., 2-kh, 2-kw].
    def tap(i, j):
        return jnp.transpose(weight[:, :, i, j]).astype(dt)     # (Cout, Cin)

    W4 = jnp.zeros((4, 4, Cout, Cin), dt)                       # [q, p, co, ci]
    W4 = W4.at[0, 0].set(tap(1, 1))                             # ee: x00
    W4 = W4.at[0, 1].set(tap(1, 2))                             # eo: x00
    W4 = W4.at[1, 1].set(tap(1, 0))                             # eo: x01
    W4 = W4.at[0, 2].set(tap(2, 1))                             # oe: x00
    W4 = W4.at[2, 2].set(tap(0, 1))                             # oe: x10
    W4 = W4.at[0, 3].set(tap(2, 2))                             # oo: x00
    W4 = W4.at[1, 3].set(tap(2, 0))                             # oo: x01
    W4 = W4.at[2, 3].set(tap(0, 2))                             # oo: x10
    W4 = W4.at[3, 3].set(tap(0, 0))                             # oo: x11
    W4 = W4.reshape(4, 4 * Cout, Cin)

    b4 = jnp.tile(bias.astype(dt), 4).reshape(4 * Cout, 1)

    kernel = functools.partial(
        _expanding_block_kernel, width=W, hw=HW, cin=Cin, cout=Cout,
        use_bn=use_bn, negative_slope=negative_slope, eps=eps)

    out = pl.pallas_call(
        kernel,
        out_shape=jax.ShapeDtypeStruct((N, 4 * Cout, HW), dt),
        grid_spec=pltpu.PrefetchScalarGridSpec(
            num_scalar_prefetch=0,
            grid=(N,),
            in_specs=[
                pl.BlockSpec((1, Cin, HWp), lambda n: (n, 0, 0)),
                pl.BlockSpec((4, 4 * Cout, Cin), lambda n: (0, 0, 0)),
                pl.BlockSpec((4 * Cout, 1), lambda n: (0, 0)),
            ],
            out_specs=pl.BlockSpec((1, 4 * Cout, HW), lambda n: (n, 0, 0)),
        ),
        compiler_params=pltpu.CompilerParams(
            dimension_semantics=("parallel",),
            vmem_limit_bytes=64 * 1024 * 1024),
    )(x_flat, W4, b4)

    # (N, 4*Cout, HW) parity-major -> NCHW (N, Cout, 2H, 2W) parity interleave.
    out = out.reshape(N, 2, 2, Cout, H, W)
    out = jnp.transpose(out, (0, 3, 4, 1, 5, 2))
    return out.reshape(N, Cout, 2 * H, 2 * W)


def _reference_forward(x, weight, bias, *, use_bn=True, negative_slope=0.01,
                       eps=1e-5):
    """Pure-JAX reference (same math, via lax conv with lhs dilation)."""
    w_flip = jnp.transpose(weight[:, :, ::-1, ::-1], (1, 0, 2, 3))  # (Cout,Cin,3,3)
    y = lax.conv_general_dilated(
        x, w_flip, window_strides=(1, 1), padding=((1, 2), (1, 2)),
        lhs_dilation=(2, 2), dimension_numbers=('NCHW', 'OIHW', 'NCHW'),
        precision=lax.Precision.HIGHEST)
    y = y + bias[None, :, None, None]
    if use_bn:
        mean = jnp.mean(y, axis=(2, 3), keepdims=True)
        var = jnp.mean(jnp.square(y - mean), axis=(2, 3), keepdims=True)
        y = (y - mean) * lax.rsqrt(var + eps)
    return jnp.where(y >= 0, y, negative_slope * y)


if __name__ == "__main__":
    key = jax.random.PRNGKey(0)
    k_w, k_b, k_x = jax.random.split(key, 3)

    N, C, H, W = 2, 4, 16, 16          # input_channels = 4 -> output channels = 2
    Cout = C // 2

    # Deterministic synthetic parameters (ConvTranspose2d weight layout: Cin,Cout,kh,kw)
    weight = 0.1 * jax.random.normal(k_w, (C, Cout, 3, 3), jnp.float32)
    bias = 0.1 * jax.random.normal(k_b, (Cout,), jnp.float32)
    x = jax.random.normal(k_x, (N, C, H, W), jnp.float32)

    out = expanding_block_forward(x, weight, bias, use_bn=True)
    out = jax.block_until_ready(out)
    assert out.shape == (N, Cout, 2 * H, 2 * W), out.shape

    ref = jax.block_until_ready(_reference_forward(x, weight, bias, use_bn=True))
    if not jnp.allclose(out, ref, atol=2e-3, rtol=2e-3):
        raise AssertionError("Pallas ExpandingBlock does not match reference")

    print("KERNEL_OK")
</pallas_src>

<mosaic_0001>
module attributes {stable_mosaic.version = 11 : i64} {
  func.func @_expanding_block_kernel(%arg0: i32, %arg1: memref<1x4x384xf32, #tpu.memory_space<vmem>>, %arg2: memref<4x8x4xf32, #tpu.memory_space<vmem>>, %arg3: memref<8x1xf32, #tpu.memory_space<vmem>>, %arg4: memref<1x8x256xf32, #tpu.memory_space<vmem>>) attributes {dimension_semantics = [#tpu.dimension_semantics<parallel>], iteration_bounds = array<i64: 2>, scalar_prefetch = 0 : i64, scratch_operands = 0 : i64, tpu.core_type = #tpu.core_type<tc>, window_params = [{transform_indices = @transform_0, window_bounds = array<i64: 1, 4, 384>}, {pipeline_mode = #tpu.pipeline_mode<synchronous>, transform_indices = @transform_1, window_bounds = array<i64: 4, 8, 4>}, {pipeline_mode = #tpu.pipeline_mode<synchronous>, transform_indices = @transform_2, window_bounds = array<i64: 8, 1>}, {transform_indices = @transform_3, window_bounds = array<i64: 1, 8, 256>}]} {
    %c0 = arith.constant 0 : index
    %c0_0 = arith.constant 0 : index
    %c0_1 = arith.constant 0 : index
    %0 = vector.load %arg1[%c0, %c0_0, %c0_1] : memref<1x4x384xf32, #tpu.memory_space<vmem>>, vector<1x4x384xf32>
    %1 = vector.shape_cast %0 : vector<1x4x384xf32> to vector<4x384xf32>
    %2 = vector.extract_strided_slice %1 {offsets = [0, 0], sizes = [4, 256], strides = [1, 1]} : vector<4x384xf32> to vector<4x256xf32>
    %3 = vector.extract_strided_slice %1 {offsets = [0, 1], sizes = [4, 256], strides = [1, 1]} : vector<4x384xf32> to vector<4x256xf32>
    %4 = vector.extract_strided_slice %1 {offsets = [0, 16], sizes = [4, 256], strides = [1, 1]} : vector<4x384xf32> to vector<4x256xf32>
    %5 = vector.extract_strided_slice %1 {offsets = [0, 17], sizes = [4, 256], strides = [1, 1]} : vector<4x384xf32> to vector<4x256xf32>
    %6 = tpu.iota {dimensions = array<i32: 1>} : vector<4x256xi32>
    %c16_i32 = arith.constant 16 : i32
    %c0_i32 = arith.constant 0 : i32
    %7 = arith.cmpi eq, %c16_i32, %c0_i32 : i32
    %c1_i32 = arith.constant 1 : i32
    %8 = arith.select %7, %c1_i32, %c16_i32 : i32
    %9 = vector.broadcast %8 : i32 to vector<4x256xi32>
    %10 = arith.remsi %6, %9 : vector<4x256xi32>
    %c0_i32_2 = arith.constant 0 : i32
    %11 = vector.broadcast %c0_i32_2 : i32 to vector<4x256xi32>
    %12 = arith.cmpi ne, %10, %11 : vector<4x256xi32>
    %c0_i32_3 = arith.constant 0 : i32
    %13 = vector.broadcast %c0_i32_3 : i32 to vector<4x256xi32>
    %14 = arith.cmpi slt, %10, %13 : vector<4x256xi32>
    %c0_i32_4 = arith.constant 0 : i32
    %15 = arith.cmpi slt, %8, %c0_i32_4 : i32
    %16 = vector.broadcast %15 : i1 to vector<4x256xi1>
    %17 = vector.broadcast %16 : vector<4x256xi1> to vector<4x256xi1>
    %18 = arith.xori %14, %17 : vector<4x256xi1>
    %19 = arith.andi %18, %12 : vector<4x256xi1>
    %20 = vector.broadcast %8 : i32 to vector<4x256xi32>
    %21 = arith.addi %10, %20 : vector<4x256xi32>
    %22 = arith.select %19, %21, %10 : vector<4x256xi1>, vector<4x256xi32>
    %c15_i32 = arith.constant 15 : i32
    %23 = vector.broadcast %c15_i32 : i32 to vector<4x256xi32>
    %24 = arith.cmpi ne, %22, %23 : vector<4x256xi32>
    %cst = arith.constant 0.000000e+00 : f32
    %25 = vector.broadcast %cst : f32 to vector<4x256xf32>
    %26 = arith.select %24, %3, %25 : vector<4x256xi1>, vector<4x256xf32>
    %cst_5 = arith.constant 0.000000e+00 : f32
    %27 = vector.broadcast %cst_5 : f32 to vector<4x256xf32>
    %28 = arith.select %24, %5, %27 : vector<4x256xi1>, vector<4x256xf32>
    %c0_6 = arith.constant 0 : index
    %c0_7 = arith.constant 0 : index
    %c0_8 = arith.constant 0 : index
    %29 = vector.load %arg2[%c0_6, %c0_7, %c0_8] : memref<4x8x4xf32, #tpu.memory_space<vmem>>, vector<1x8x4xf32>
    %30 = vector.shape_cast %29 : vector<1x8x4xf32> to vector<8x4xf32>
    %cst_9 = arith.constant dense<0.000000e+00> : vector<8x256xf32>
    %31 = tpu.matmul %30, %2, %cst_9 {dimension_numbers = #tpu.dot_dimension_numbers<[1], [0], [0], [1], [0, 0, 1, 1], [], []>} : vector<8x4xf32>, vector<4x256xf32>, vector<8x256xf32> -> vector<8x256xf32>
    %c1 = arith.constant 1 : index
    %c0_10 = arith.constant 0 : index
    %c0_11 = arith.constant 0 : index
    %32 = vector.load %arg2[%c1, %c0_10, %c0_11] : memref<4x8x4xf32, #tpu.memory_space<vmem>>, vector<1x8x4xf32>
    %33 = vector.shape_cast %32 : vector<1x8x4xf32> to vector<8x4xf32>
    %cst_12 = arith.constant dense<0.000000e+00> : vector<8x256xf32>
    %34 = tpu.matmul %33, %26, %cst_12 {dimension_numbers = #tpu.dot_dimension_numbers<[1], [0], [0], [1], [0, 0, 1, 1], [], []>} : vector<8x4xf32>, vector<4x256xf32>, vector<8x256xf32> -> vector<8x256xf32>
    %35 = arith.addf %31, %34 : vector<8x256xf32>
    %c2 = arith.constant 2 : index
    %c0_13 = arith.constant 0 : index
    %c0_14 = arith.constant 0 : index
    %36 = vector.load %arg2[%c2, %c0_13, %c0_14] : memref<4x8x4xf32, #tpu.memory_space<vmem>>, vector<1x8x4xf32>
    %37 = vector.shape_cast %36 : vector<1x8x4xf32> to vector<8x4xf32>
    %cst_15 = arith.constant dense<0.000000e+00> : vector<8x256xf32>
    %38 = tpu.matmul %37, %4, %cst_15 {dimension_numbers = #tpu.dot_dimension_numbers<[1], [0], [0], [1], [0, 0, 1, 1], [], []>} : vector<8x4xf32>, vector<4x256xf32>, vector<8x256xf32> -> vector<8x256xf32>
    %39 = arith.addf %35, %38 : vector<8x256xf32>
    %c3 = arith.constant 3 : index
    %c0_16 = arith.constant 0 : index
    %c0_17 = arith.constant 0 : index
    %40 = vector.load %arg2[%c3, %c0_16, %c0_17] : memref<4x8x4xf32, #tpu.memory_space<vmem>>, vector<1x8x4xf32>
    %41 = vector.shape_cast %40 : vector<1x8x4xf32> to vector<8x4xf32>
    %cst_18 = arith.constant dense<0.000000e+00> : vector<8x256xf32>
    %42 = tpu.matmul %41, %28, %cst_18 {dimension_numbers = #tpu.dot_dimension_numbers<[1], [0], [0], [1], [0, 0, 1, 1], [], []>} : vector<8x4xf32>, vector<4x256xf32>, vector<8x256xf32> -> vector<8x256xf32>
    %43 = arith.addf %39, %42 : vector<8x256xf32>
    %c0_19 = arith.constant 0 : index
    %c0_20 = arith.constant 0 : index
    %44 = vector.load %arg3[%c0_19, %c0_20] : memref<8x1xf32, #tpu.memory_space<vmem>>, vector<8x1xf32>
    %45 = vector.broadcast %44 : vector<8x1xf32> to vector<8x256xf32>
    %46 = arith.addf %43, %45 : vector<8x256xf32>
    %cst_21 = arith.constant dense<0.000000e+00> : vector<8xf32>
    %47 = vector.multi_reduction <add>, %46, %cst_21 [1] : vector<8x256xf32> to vector<8xf32>
    %48 = vector.shape_cast %47 : vector<8xf32> to vector<8x1xf32>
    %49 = vector.extract_strided_slice %48 {offsets = [0, 0], sizes = [2, 1], strides = [1, 1]} : vector<8x1xf32> to vector<2x1xf32>
    %50 = vector.extract_strided_slice %48 {offsets = [2, 0], sizes = [2, 1], strides = [1, 1]} : vector<8x1xf32> to vector<2x1xf32>
    %51 = arith.addf %49, %50 : vector<2x1xf32>
    %52 = vector.extract_strided_slice %48 {offsets = [4, 0], sizes = [2, 1], strides = [1, 1]} : vector<8x1xf32> to vector<2x1xf32>
    %53 = arith.addf %51, %52 : vector<2x1xf32>
    %54 = vector.extract_strided_slice %48 {offsets = [6, 0], sizes = [2, 1], strides = [1, 1]} : vector<8x1xf32> to vector<2x1xf32>
    %55 = arith.addf %53, %54 : vector<2x1xf32>
    %cst_22 = arith.constant 9.765625E-4 : f32
    %56 = vector.broadcast %cst_22 : f32 to vector<2x1xf32>
    %57 = arith.mulf %55, %56 : vector<2x1xf32>
    %58 = tpu.concatenate %57, %57, %57, %57 in 0 : vector<2x1xf32>, vector<2x1xf32>, vector<2x1xf32>, vector<2x1xf32> -> vector<8x1xf32>
    %59 = vector.broadcast %58 : vector<8x1xf32> to vector<8x256xf32>
    %60 = arith.subf %46, %59 : vector<8x256xf32>
    %61 = arith.mulf %60, %60 : vector<8x256xf32>
    %cst_23 = arith.constant dense<0.000000e+00> : vector<8xf32>
    %62 = vector.multi_reduction <add>, %61, %cst_23 [1] : vector<8x256xf32> to vector<8xf32>
    %63 = vector.shape_cast %62 : vector<8xf32> to vector<8x1xf32>
    %64 = vector.extract_strided_slice %63 {offsets = [0, 0], sizes = [2, 1], strides = [1, 1]} : vector<8x1xf32> to vector<2x1xf32>
    %65 = vector.extract_strided_slice %63 {offsets = [2, 0], sizes = [2, 1], strides = [1, 1]} : vector<8x1xf32> to vector<2x1xf32>
    %66 = arith.addf %64, %65 : vector<2x1xf32>
    %67 = vector.extract_strided_slice %63 {offsets = [4, 0], sizes = [2, 1], strides = [1, 1]} : vector<8x1xf32> to vector<2x1xf32>
    %68 = arith.addf %66, %67 : vector<2x1xf32>
    %69 = vector.extract_strided_slice %63 {offsets = [6, 0], sizes = [2, 1], strides = [1, 1]} : vector<8x1xf32> to vector<2x1xf32>
    %70 = arith.addf %68, %69 : vector<2x1xf32>
    %cst_24 = arith.constant 9.765625E-4 : f32
    %71 = vector.broadcast %cst_24 : f32 to vector<2x1xf32>
    %72 = arith.mulf %70, %71 : vector<2x1xf32>
    %73 = tpu.concatenate %72, %72, %72, %72 in 0 : vector<2x1xf32>, vector<2x1xf32>, vector<2x1xf32>, vector<2x1xf32> -> vector<8x1xf32>
    %cst_25 = arith.constant 9.99999974E-6 : f32
    %74 = vector.broadcast %cst_25 : f32 to vector<8x1xf32>
    %75 = arith.addf %73, %74 : vector<8x1xf32>
    %76 = math.rsqrt %75 : vector<8x1xf32>
    %77 = vector.broadcast %76 : vector<8x1xf32> to vector<8x256xf32>
    %78 = arith.mulf %60, %77 : vector<8x256xf32>
    %cst_26 = arith.constant 0.000000e+00 : f32
    %79 = vector.broadcast %cst_26 : f32 to vector<8x256xf32>
    %80 = arith.cmpf oge, %78, %79 : vector<8x256xf32>
    %cst_27 = arith.constant 0.00999999977 : f32
    %81 = vector.broadcast %cst_27 : f32 to vector<8x256xf32>
    %82 = arith.mulf %81, %78 : vector<8x256xf32>
    %83 = arith.select %80, %78, %82 : vector<8x256xi1>, vector<8x256xf32>
    %c0_28 = arith.constant 0 : index
    %c0_29 = arith.constant 0 : index
    %c0_30 = arith.constant 0 : index
    %84 = vector.load %arg4[%c0_28, %c0_29, %c0_30] : memref<1x8x256xf32, #tpu.memory_space<vmem>>, vector<1x8x256xf32>
    %85 = vector.shape_cast %84 : vector<1x8x256xf32> to vector<8x256xf32>
    %86 = vector.shape_cast %83 : vector<8x256xf32> to vector<1x8x256xf32>
    tpu.vector_store %arg4[%c0_28, %c0_29, %c0_30], %86 {strides = array<i32>} : memref<1x8x256xf32, #tpu.memory_space<vmem>>, vector<1x8x256xf32>,
    return
  }
  func.func @transform_0(%arg0: i32) -> (i32, i32, i32) {
    %c0_i32 = arith.constant 0 : i32
    %c0_i32_0 = arith.constant 0 : i32
    %c0_i32_1 = arith.constant 0 : i32
    return %arg0, %c0_i32, %c0_i32_0 : i32, i32, i32
  }
  func.func @transform_1(%arg0: i32) -> (i32, i32, i32) {
    %c0_i32 = arith.constant 0 : i32
    %c0_i32_0 = arith.constant 0 : i32
    %c0_i32_1 = arith.constant 0 : i32
    %c0_i32_2 = arith.constant 0 : i32
    return %c0_i32, %c0_i32_0, %c0_i32_1 : i32, i32, i32
  }
  func.func @transform_2(%arg0: i32) -> (i32, i32) {
    %c0_i32 = arith.constant 0 : i32
    %c0_i32_0 = arith.constant 0 : i32
    %c0_i32_1 = arith.constant 0 : i32
    return %c0_i32, %c0_i32_0 : i32, i32
  }
  func.func @transform_3(%arg0: i32) -> (i32, i32, i32) {
    %c0_i32 = arith.constant 0 : i32
    %c0_i32_0 = arith.constant 0 : i32
    %c0_i32_1 = arith.constant 0 : i32
    return %arg0, %c0_i32, %c0_i32_0 : i32, i32, i32
  }
}

</mosaic_0001>

<llo_original>
// kernel: tpu_custom_call.1
$region0: #{tpu_custom_call.1}
  #allocation0 [shape = 'u32[]', space=smem, size = 0x4, offset = 0x4, fixed_abs, tag = 'smem constant byte address 0x4 - core index']
  #allocation1 [shape = 'u32[72,128]{1,0:T(1,128)}', space=vmem, size = 0x9000, scoped, tag = 'internal scratch']
  %s0 = inlined_call_operand.vmem [shape: f32[2,4,384], index: 0, kind: input, shape index: {}]
  %s1 = inlined_call_operand.vmem [shape: f32[4,8,4], index: 1, kind: input, shape index: {}]
  %s2 = inlined_call_operand.vmem [shape: f32[8,1], index: 2, kind: input, shape index: {}]
  %s3 = inlined_call_operand.hbm [shape: f32[2,8,256], index: 3, kind: output, shape index: {}]
  %s4 = sld [smem:[#allocation0]]
  $region45: #{tpu_custom_call.1} parent=0
    _
  %s6 = ssub.s32 1, %s4
  %s7 = scalar_select 0, %s6, %s4
  $region1: #{tpu_custom_call.1} parent=0
    #allocation2 [shape = 'u8[16384]{0}', space=vmem, size = 0x4000, scoped, tag = 'output window, operand 0']
    #allocation3 [shape = 's32[2]{0}', space=sflag, size = 0x8, scoped, tag = 'scoped memory for tpu_custom_call.1']
    %8 = vsyncpa [#allocation3], 0
    %s9 = scalar_lea.sflag [#allocation3], 1
    %10 = vsyncpa %s9, 0
    loop: start=0, step=1, limit=4
    $region2: #{tpu_custom_call.1} parent=1 // loop_pre_header
      _
    $region3: #{tpu_custom_call.1} parent=1 // loop_header
      %s12 = sphi 0, %s16
      %p13 = scmp.ge.s32.totalorder %s12, 4
      %s22 = sphi 0, %s24
      %s25 = sphi 0, %s22
      %s26 = sphi 0, %s25
      %s42 = sphi 0, %s26
      %s46 = sphi 0, %s46
      %s48 = sphi 0, %s46
      %s49 = sphi 0, %s48
      %s63 = sphi 0, %s49
      %s67 = sphi 0, %s67
      %s69 = sphi 0, %s67
      %s70 = sphi 0, %s69
      %s84 = sphi 0, %s70
      %s90 = sphi 0, %s92
      %s93 = sphi 0, %s90
      %s94 = sphi 0, %s93
      %s110 = sphi 0, %s94
    $region4: #{tpu_custom_call.1} parent=1 // loop_header_branch
      %15 = sbr.rel (%p13) target = $region8
    $region5: #{tpu_custom_call.1} parent=1 // loop_body
      %s17 = ssub.s32 %s12, 1
      %s18 = ssub.s32 %s12, 2
      %s19 = sadd.s32 %s12, 1
      %s20 = ssub.s32 %s12, %s19
      %p21 = scmp.eq.s32.totalorder %s20, 0
      %s23 = sadd.s32 %s22, 1
      %s24 = scalar_select %p21, %s22, %s23
      %p27 = pneg %p21
      %p28 = scmp.eq.s32.totalorder %s12, 1
      %p29 = por %p27, %p28
      %p30 = scmp.ne.s32.totalorder %s22, %s25
      %p31 = scmp.eq.s32.totalorder %s12, 0
      %p32 = por %p30, %p31
      %p33 = scmp.ne.s32.totalorder %s22, %s25
      %p34 = scmp.eq.s32.totalorder %s17, 1
      %p35 = por %p33, %p34
      %p36 = scmp.ne.s32.totalorder %s25, %s26
      %p37 = scmp.eq.s32.totalorder %s17, 0
      %p38 = por %p36, %p37
      %p39 = scmp.ne.s32.totalorder %s25, %s26
      %p40 = scmp.eq.s32.totalorder %s18, 1
      %p41 = por %p39, %p40
      %p43 = scmp.ne.s32.totalorder %s26, %s42
      %p44 = scmp.eq.s32.totalorder %s18, 0
      %p45 = por %p43, %p44
      %s47 = sadd.s32 %s46, 1
      %p50 = scmp.eq.s32.totalorder %s12, 1
      %p51 = scmp.ne.s32.totalorder %s46, %s48
      %p52 = scmp.eq.s32.totalorder %s12, 0
      %p53 = por %p51, %p52
      %p54 = scmp.ne.s32.totalorder %s46, %s48
      %p55 = scmp.eq.s32.totalorder %s17, 1
      %p56 = por %p54, %p55
      %p57 = scmp.ne.s32.totalorder %s48, %s49
      %p58 = scmp.eq.s32.totalorder %s17, 0
      %p59 = por %p57, %p58
      %p60 = scmp.ne.s32.totalorder %s48, %s49
      %p61 = scmp.eq.s32.totalorder %s18, 1
      %p62 = por %p60, %p61
      %p64 = scmp.ne.s32.totalorder %s49, %s63
      %p65 = scmp.eq.s32.totalorder %s18, 0
      %p66 = por %p64, %p65
      %s68 = sadd.s32 %s67, 1
      %p71 = scmp.eq.s32.totalorder %s12, 1
      %p72 = scmp.ne.s32.totalorder %s67, %s69
      %p73 = scmp.eq.s32.totalorder %s12, 0
      %p74 = por %p72, %p73
      %p75 = scmp.ne.s32.totalorder %s67, %s69
      %p76 = scmp.eq.s32.totalorder %s17, 1
      %p77 = por %p75, %p76
      %p78 = scmp.ne.s32.totalorder %s69, %s70
      %p79 = scmp.eq.s32.totalorder %s17, 0
      %p80 = por %p78, %p79
      %p81 = scmp.ne.s32.totalorder %s69, %s70
      %p82 = scmp.eq.s32.totalorder %s18, 1
      %p83 = por %p81, %p82
      %p85 = scmp.ne.s32.totalorder %s70, %s84
      %p86 = scmp.eq.s32.totalorder %s18, 0
      %p87 = por %p85, %p86
      %s88 = ssub.s32 %s12, %s19
      %p89 = scmp.eq.s32.totalorder %s88, 0
      %s91 = sadd.s32 %s90, 1
      %s92 = scalar_select %p89, %s90, %s91
      %p95 = pneg %p89
      %p96 = scmp.eq.s32.totalorder %s12, 1
      %p97 = por %p95, %p96
      %p98 = scmp.ne.s32.totalorder %s90, %s93
      %p99 = scmp.eq.s32.totalorder %s12, 0
      %p100 = por %p98, %p99
      %p101 = scmp.ne.s32.totalorder %s90, %s93
      %p102 = scmp.eq.s32.totalorder %s17, 1
      %p103 = por %p101, %p102
      %p104 = scmp.ne.s32.totalorder %s93, %s94
      %p105 = scmp.eq.s32.totalorder %s17, 0
      %p106 = por %p104, %p105
      %p107 = scmp.ne.s32.totalorder %s93, %s94
      %p108 = scmp.eq.s32.totalorder %s18, 1
      %p109 = por %p107, %p108
      %p111 = scmp.ne.s32.totalorder %s94, %s110
      %p112 = scmp.eq.s32.totalorder %s18, 0
      %p113 = por %p111, %p112
      %p114 = scmp.le.s32.totalorder 1, %s12
      %p115 = scmp.lt.s32.totalorder %s12, 3
      %p116 = pnand %p114, %p115
      %p117 = pneg %p116
      // Predicated region
      $region9: #{tpu_custom_call.1} parent=5 // pred_check
        _
      $region10: #{tpu_custom_call.1} parent=5 // pred_check_branch
        %119 = sbr.rel (%p116) target = $region12
      $region11: #{tpu_custom_call.1} parent=5 // pred_region
        %s120 = ssub.s32 %s12, 1
        // Predicated region
        $region13: #{tpu_custom_call.1} parent=11 // pred_check
          %p121 = pneg %p59
        $region14: #{tpu_custom_call.1} parent=11 // pred_check_branch
          %123 = sbr.rel (%p121) target = $region16
        $region15: #{tpu_custom_call.1} parent=11 // pred_region
          _
        $region16: #{tpu_custom_call.1} parent=11 // pred_fallthru
          _
        // Predicated region
        $region17: #{tpu_custom_call.1} parent=11 // pred_check
          %p124 = pneg %p80
        $region18: #{tpu_custom_call.1} parent=11 // pred_check_branch
          %126 = sbr.rel (%p124) target = $region20
        $region19: #{tpu_custom_call.1} parent=11 // pred_region
          _
        $region20: #{tpu_custom_call.1} parent=11 // pred_fallthru
          _
      $region12: #{tpu_custom_call.1} parent=5 // pred_fallthru
        _
      %p127 = scmp.lt.s32.totalorder %s12, 2
      // Predicated region
      $region21: #{tpu_custom_call.1} parent=5 // pred_check
        %p128 = pneg %p127
      $region22: #{tpu_custom_call.1} parent=5 // pred_check_branch
        %130 = sbr.rel (%p128) target = $region24
      $region23: #{tpu_custom_call.1} parent=5 // pred_region
        // Predicated region
        $region25: #{tpu_custom_call.1} parent=23 // pred_check
          %p131 = pneg %p32
        $region26: #{tpu_custom_call.1} parent=23 // pred_check_branch
          %133 = sbr.rel (%p131) target = $region28
        $region27: #{tpu_custom_call.1} parent=23 // pred_region
          %p134 = scmp.lt.s32.totalorder %s12, 1
          %s135 = scalar_select %p134, %s12, 1
          %s136 = smul.addr %s135, 3
          %s137 = smul.addr %s136, 4
          %s138 = scalar_lea.vmem %s0, %s137
        $region28: #{tpu_custom_call.1} parent=23 // pred_fallthru
          _
      $region24: #{tpu_custom_call.1} parent=5 // pred_fallthru
        _
      %p139 = scmp.le.s32.totalorder 1, %s12
      %p140 = scmp.lt.s32.totalorder %s12, 3
      %p141 = pnand %p139, %p140
      %p142 = pneg %p141
      // Predicated region
      $region29: #{tpu_custom_call.1} parent=5 // pred_check
        _
      $region30: #{tpu_custom_call.1} parent=5 // pred_check_branch
        %144 = sbr.rel (%p141) target = $region32
      $region31: #{tpu_custom_call.1} parent=5 // pred_region
        %s145 = ssub.s32 %s12, 1
        %p146 = scmp.lt.s32.totalorder %s17, 1
        %s147 = scalar_select %p146, %s17, 1
        %s148 = smul.addr %s147, 3
        %s149 = smul.addr %s148, 4
        %s150 = scalar_lea.vmem %s0, %s149
        %p151 = pneg %p38
        %p152 = pneg %p35
        %p153 = pneg %p59
        %p154 = pneg %p56
        %p155 = pneg %p80
        %p156 = pneg %p77
        %p157 = pneg %p106
        %p158 = pneg %p103
        %s159 = sand.u32 %s93, 1
        %s160 = scalar_lea.sflag [#allocation3], %s159
        %s161 = sand.u32 %s93, 1
        %s162 = smul.addr %s161, 16
        %s163 = scalar_lea.vmem [#allocation2], %s162
        %p164 = scmp.lt.s32.totalorder %s17, 1
        %s165 = scalar_select %p164, %s17, 1
        %s166 = smul.addr %s165, 3
        %s167 = smul.addr %s166, 4
        %s168 = scalar_lea.vmem %s0, %s167
        %v169 = vld [vmem:[%s168] sm:$0xff]
        %v170 = vld [vmem:[%s168 + $0x8] sm:$0xf]
        %v171 = vlaneseq
        %v172 = vand.u32 %v171, 127
        %v173 = vadd.s32 %v172, 128
        %vm174 = vcmp.lt.s32.totalorder %v172, 0
        %v175 = vsub.s32 0, %v172
        %v176 = vsel %vm174, %v175, %v172
        %v177 = vshrl.u32 %v176, 4
        %v178 = vand.u32 %v176, 15
        %v179 = vsub.s32 0, %v178
        %v180 = vsel %vm174, %v179, %v178
        %vm181 = vcmp.lt.s32.totalorder %v173, 0
        %v182 = vsub.s32 0, %v173
        %v183 = vsel %vm181, %v182, %v173
        %v184 = vshrl.u32 %v183, 4
        %v185 = vand.u32 %v183, 15
        %v186 = vsub.s32 0, %v185
        %v187 = vsel %vm181, %v186, %v185
        %vm188 = vcmp.ne.s32.totalorder %v180, 0
        %vm189 = vcmp.ne.s32.totalorder %v187, 0
        %vm190 = vcmp.lt.s32.totalorder %v180, 0
        %vm191 = vcmp.lt.s32.totalorder %v187, 0
        %vm192 = vmand %vm190, %vm188
        %vm193 = vmand %vm191, %vm189
        %v194 = vadd.s32 %v180, 16
        %v195 = vadd.s32 %v187, 16
        %v196 = vsel %vm192, %v194, %v180
        %v197 = vsel %vm193, %v195, %v187
        %vm198 = vcmp.ne.s32.totalorder %v196, 15
        %vm199 = vcmp.ne.s32.totalorder %v197, 15
        %202 = vst [vmem:[#allocation1] ss:$2 sm:$0xff] %v169
        %s203 = scalar_lea.vmem [#allocation1], 16
        %204 = vst [vmem:[%s203] ss:$2 sm:$0xff] %v170
        %v205 = vld.sshfl [vmem:[#allocation1] sm:$0xff pattern:$0x75316420]
        %v206 = vld.sshfl [vmem:[#allocation1 + $0x8] sm:$0xff pattern:$0x75316420]
        %v207 = vld.sshfl [vmem:[#allocation1 + $0x10] sm:$0xff pattern:$0x75316420]
        %208 = vrot.lane.b32.xlu0 %v205, 127
        %v209 = vpop.permute.xlu0 %208
        %210 = vrot.lane.b32.xlu0 %v206, 127
        %v211 = vpop.permute.xlu0 %210
        %212 = vrot.lane.b32.xlu0 %v207, 127
        %v213 = vpop.permute.xlu0 %212
        %vm214 = vcmask 1039360
        %v215 = vsel %vm214, %v209, %v211
        %v216 = vsel %vm214, %v211, %v213
        %v219 = vsel %vm198, %v215, 0.0
        %v220 = vsel %vm199, %v216, 0.0
        %221 = vst [vmem:[#allocation1] ss:$2 sm:$0xff] %v169
        %s222 = scalar_lea.vmem [#allocation1], 16
        %223 = vst [vmem:[%s222] ss:$2 sm:$0xff] %v170
        %v224 = vld.sshfl [vmem:[#allocation1] sm:$0xff pattern:$0x75316420]
        %v225 = vld.sshfl [vmem:[#allocation1 + $0x8] sm:$0xff pattern:$0x75316420]
        %v226 = vld.sshfl [vmem:[#allocation1 + $0x10] sm:$0xff pattern:$0x75316420]
        %227 = vrot.lane.b32.xlu0 %v224, 111
        %v228 = vpop.permute.xlu0 %227
        %229 = vrot.lane.b32.xlu0 %v225, 111
        %v230 = vpop.permute.xlu0 %229
        %231 = vrot.lane.b32.xlu0 %v226, 111
        %v232 = vpop.permute.xlu0 %231
        %vm233 = vcmask 908288
        %v234 = vsel %vm233, %v228, %v230
        %v235 = vsel %vm233, %v230, %v232
        %v238 = vsel %vm198, %v234, 0.0
        %v239 = vsel %vm199, %v235, 0.0
        %v240 = vld [vmem:[%s1] sm:$0xff]
        %s241 = scalar_lea.vmem %s1, 8
        %v242 = vld [vmem:[%s241] sm:$0xff]
        %vm243 = vcmask 31744
        %v245 = vsel %vm243, %v242, 0
        %vm247 = vcmask 1043456
        %v249 = vsel %vm247, %v219, 0
        %v252 = vsel %vm247, %v220, 0
        %254 = vmatpush.msra.mxu0 0.0
        %255 = vmatpush.msra.mxu0 0.0
        %256 = vmatpush.msra.mxu0 0.0
        %257 = vmatpush.msra.mxu0 0.0
        %258 = vmatpush.msra.mxu0 0.0
        %259 = vmatpush.msra.mxu0 0.0
        %260 = vmatpush.msra.mxu0 0.0
        %261 = vmatpush.msra.mxu0 0.0
        %262 = vmatpush.msra.mxu0 0.0
        %263 = vmatpush.msra.mxu0 0.0
        %264 = vmatpush.msra.mxu0 0.0
        %265 = vmatpush.msra.mxu0 0.0
        %266 = vmatpush.msra.mxu0 0.0
        %267 = vmatpush.msra.mxu0 0.0
        %268 = vmatpush.msra.mxu0 0.0
        %269 = vmatpush.msra.mxu0 %v249
        %270 = vmatmul.f32.gmra.mxu0 %v245
        %v271 = vpop.f32.mrf.mxu0
        %v272 = vadd.f32 0.0, %v271
        %273 = vdwg.mxu0
        %274 = vmatpush.msra.mxu0 0.0
        %275 = vmatpush.msra.mxu0 0.0
        %276 = vmatpush.msra.mxu0 0.0
        %277 = vmatpush.msra.mxu0 0.0
        %278 = vmatpush.msra.mxu0 0.0
        %279 = vmatpush.msra.mxu0 0.0
        %280 = vmatpush.msra.mxu0 0.0
        %281 = vmatpush.msra.mxu0 0.0
        %282 = vmatpush.msra.mxu0 0.0
        %283 = vmatpush.msra.mxu0 0.0
        %284 = vmatpush.msra.mxu0 0.0
        %285 = vmatpush.msra.mxu0 0.0
        %286 = vmatpush.msra.mxu0 0.0
        %287 = vmatpush.msra.mxu0 0.0
        %288 = vmatpush.msra.mxu0 0.0
        %289 = vmatpush.msra.mxu0 %v252
        %290 = vmatmul.f32.gmra.mxu0 %v245
        %v291 = vpop.f32.mrf.mxu0
        %v292 = vadd.f32 0.0, %v291
        %293 = vdwg.mxu0
        %294 = vst [vmem:[#allocation1] ss:$2 sm:$0xff] %v169
        %v295 = vld.sshfl [vmem:[#allocation1] sm:$0xff pattern:$0x75316420]
        %v296 = vld.sshfl [vmem:[#allocation1 + $0x8] sm:$0xff pattern:$0x75316420]
        %v298 = vsel %vm243, %v240, 0
        %v300 = vsel %vm247, %v295, 0
        %v302 = vsel %vm247, %v296, 0
        %304 = vmatpush.msra.mxu0 0.0
        %305 = vmatpush.msra.mxu0 0.0
        %306 = vmatpush.msra.mxu0 0.0
        %307 = vmatpush.msra.mxu0 0.0
        %308 = vmatpush.msra.mxu0 0.0
        %309 = vmatpush.msra.mxu0 0.0
        %310 = vmatpush.msra.mxu0 0.0
        %311 = vmatpush.msra.mxu0 0.0
        %312 = vmatpush.msra.mxu0 0.0
        %313 = vmatpush.msra.mxu0 0.0
        %314 = vmatpush.msra.mxu0 0.0
        %315 = vmatpush.msra.mxu0 0.0
        %316 = vmatpush.msra.mxu0 0.0
        %317 = vmatpush.msra.mxu0 0.0
        %318 = vmatpush.msra.mxu0 0.0
        %319 = vmatpush.msra.mxu0 %v300
        %320 = vmatmul.f32.gmra.mxu0 %v298
        %v321 = vpop.f32.mrf.mxu0
        %v322 = vadd.f32 %v272, %v321
        %323 = vdwg.mxu0
        %324 = vmatpush.msra.mxu0 0.0
        %325 = vmatpush.msra.mxu0 0.0
        %326 = vmatpush.msra.mxu0 0.0
        %327 = vmatpush.msra.mxu0 0.0
        %328 = vmatpush.msra.mxu0 0.0
        %329 = vmatpush.msra.mxu0 0.0
        %330 = vmatpush.msra.mxu0 0.0
        %331 = vmatpush.msra.mxu0 0.0
        %332 = vmatpush.msra.mxu0 0.0
        %333 = vmatpush.msra.mxu0 0.0
        %334 = vmatpush.msra.mxu0 0.0
        %335 = vmatpush.msra.mxu0 0.0
        %336 = vmatpush.msra.mxu0 0.0
        %337 = vmatpush.msra.mxu0 0.0
        %338 = vmatpush.msra.mxu0 0.0
        %339 = vmatpush.msra.mxu0 %v302
        %340 = vmatmul.f32.gmra.mxu0 %v298
        %v341 = vpop.f32.mrf.mxu0
        %v342 = vadd.f32 %v292, %v341
        %343 = vdwg.mxu0
        %s344 = scalar_lea.vmem %s1, 16
        %v345 = vld [vmem:[%s344] sm:$0xff]
        %346 = vst [vmem:[#allocation1] ss:$2 sm:$0xff] %v169
        %s347 = scalar_lea.vmem [#allocation1], 16
        %348 = vst [vmem:[%s347] ss:$2 sm:$0xff] %v170
        %v349 = vld.sshfl [vmem:[#allocation1] sm:$0xff pattern:$0x75316420]
        %v350 = vld.sshfl [vmem:[#allocation1 + $0x8] sm:$0xff pattern:$0x75316420]
        %v351 = vld.sshfl [vmem:[#allocation1 + $0x10] sm:$0xff pattern:$0x75316420]
        %352 = vrot.lane.b32.xlu0 %v349, 112
        %v353 = vpop.permute.xlu0 %352
        %354 = vrot.lane.b32.xlu0 %v350, 112
        %v355 = vpop.permute.xlu0 %354
        %356 = vrot.lane.b32.xlu0 %v351, 112
        %v357 = vpop.permute.xlu0 %356
        %vm358 = vcmask 916480
        %v359 = vsel %vm358, %v353, %v355
        %v360 = vsel %vm358, %v355, %v357
        %v362 = vsel %vm243, %v345, 0
        %v364 = vsel %vm247, %v359, 0
        %v366 = vsel %vm247, %v360, 0
        %368 = vmatpush.msra.mxu0 0.0
        %369 = vmatpush.msra.mxu0 0.0
        %370 = vmatpush.msra.mxu0 0.0
        %371 = vmatpush.msra.mxu0 0.0
        %372 = vmatpush.msra.mxu0 0.0
        %373 = vmatpush.msra.mxu0 0.0
        %374 = vmatpush.msra.mxu0 0.0
        %375 = vmatpush.msra.mxu0 0.0
        %376 = vmatpush.msra.mxu0 0.0
        %377 = vmatpush.msra.mxu0 0.0
        %378 = vmatpush.msra.mxu0 0.0
        %379 = vmatpush.msra.mxu0 0.0
        %380 = vmatpush.msra.mxu0 0.0
        %381 = vmatpush.msra.mxu0 0.0
        %382 = vmatpush.msra.mxu0 0.0
        %383 = vmatpush.msra.mxu0 %v364
        %384 = vmatmul.f32.gmra.mxu0 %v362
        %v385 = vpop.f32.mrf.mxu0
        %v386 = vadd.f32 0.0, %v385
        %387 = vdwg.mxu0
        %388 = vmatpush.msra.mxu0 0.0
        %389 = vmatpush.msra.mxu0 0.0
        %390 = vmatpush.msra.mxu0 0.0
        %391 = vmatpush.msra.mxu0 0.0
        %392 = vmatpush.msra.mxu0 0.0
        %393 = vmatpush.msra.mxu0 0.0
        %394 = vmatpush.msra.mxu0 0.0
        %395 = vmatpush.msra.mxu0 0.0
        %396 = vmatpush.msra.mxu0 0.0
        %397 = vmatpush.msra.mxu0 0.0
        %398 = vmatpush.msra.mxu0 0.0
        %399 = vmatpush.msra.mxu0 0.0
        %400 = vmatpush.msra.mxu0 0.0
        %401 = vmatpush.msra.mxu0 0.0
        %402 = vmatpush.msra.mxu0 0.0
        %403 = vmatpush.msra.mxu0 %v366
        %404 = vmatmul.f32.gmra.mxu0 %v362
        %v405 = vpop.f32.mrf.mxu0
        %v406 = vadd.f32 0.0, %v405
        %407 = vdwg.mxu0
        %v408 = vadd.f32 %v322, %v386
        %v409 = vadd.f32 %v342, %v406
        %s410 = scalar_lea.vmem %s1, 24
        %v411 = vld [vmem:[%s410] sm:$0xff]
        %v413 = vsel %vm243, %v411, 0
        %v416 = vsel %vm247, %v238, 0
        %v419 = vsel %vm247, %v239, 0
        %421 = vmatpush.msra.mxu0 0.0
        %422 = vmatpush.msra.mxu0 0.0
        %423 = vmatpush.msra.mxu0 0.0
        %424 = vmatpush.msra.mxu0 0.0
        %425 = vmatpush.msra.mxu0 0.0
        %426 = vmatpush.msra.mxu0 0.0
        %427 = vmatpush.msra.mxu0 0.0
        %428 = vmatpush.msra.mxu0 0.0
        %429 = vmatpush.msra.mxu0 0.0
        %430 = vmatpush.msra.mxu0 0.0
        %431 = vmatpush.msra.mxu0 0.0
        %432 = vmatpush.msra.mxu0 0.0
        %433 = vmatpush.msra.mxu0 0.0
        %434 = vmatpush.msra.mxu0 0.0
        %435 = vmatpush.msra.mxu0 0.0
        %436 = vmatpush.msra.mxu0 %v416
        %437 = vmatmul.f32.gmra.mxu0 %v413
        %v438 = vpop.f32.mrf.mxu0
        %v439 = vadd.f32 0.0, %v438
        %440 = vdwg.mxu0
        %441 = vmatpush.msra.mxu0 0.0
        %442 = vmatpush.msra.mxu0 0.0
        %443 = vmatpush.msra.mxu0 0.0
        %444 = vmatpush.msra.mxu0 0.0
        %445 = vmatpush.msra.mxu0 0.0
        %446 = vmatpush.msra.mxu0 0.0
        %447 = vmatpush.msra.mxu0 0.0
        %448 = vmatpush.msra.mxu0 0.0
        %449 = vmatpush.msra.mxu0 0.0
        %450 = vmatpush.msra.mxu0 0.0
        %451 = vmatpush.msra.mxu0 0.0
        %452 = vmatpush.msra.mxu0 0.0
        %453 = vmatpush.msra.mxu0 0.0
        %454 = vmatpush.msra.mxu0 0.0
        %455 = vmatpush.msra.mxu0 0.0
        %456 = vmatpush.msra.mxu0 %v419
        %457 = vmatmul.f32.gmra.mxu0 %v413
        %v458 = vpop.f32.mrf.mxu0
        %v459 = vadd.f32 0.0, %v458
        %460 = vdwg.mxu0
        %v461 = vadd.f32 %v408, %v439
        %v462 = vadd.f32 %v409, %v459
        %v463 = vld [vmem:[%s2] sm:$0xff]
        %465 = vset.pattern.permute.xlu0 0
        %466 = vperm.xlu0 %465, %v463
        %v467 = vpop.permute.xlu0 %466
        %v469 = vadd.f32 %v461, %v467
        %v470 = vadd.f32 %v462, %v467
        %v471 = vadd.f32 %v469, %v470
        %472 = vadd.xlane.f32.xlu0 %v471
        %v473 = vpop.xlane.xlu0 %472
        %v475 = vrot.slane %v473, 2
        %v477 = vadd.f32 %v473, %v475
        %v478 = vrot.slane %v473, 4
        %v480 = vadd.f32 %v477, %v478
        %v481 = vrot.slane %v473, 6
        %v483 = vadd.f32 %v480, %v481
        %v484 = vmul.f32 %v483, 0.0009765625
        %v486 = vrot.slane %v484, 6
        %v488 = vrot.slane %v484, 4
        %v490 = vrot.slane %v484, 2
        %vm492 = vcmask 1041408
        %v493 = vsel %vm492, %v484, %v486
        %v494 = vsel %vm247, %v493, %v488
        %vm495 = vcmask 1045504
        %v496 = vsel %vm495, %v494, %v490
        %498 = vset.pattern.permute.xlu0 0
        %499 = vperm.xlu0 %498, %v496
        %v500 = vpop.permute.xlu0 %499
        %v502 = vsub.f32 %v469, %v500
        %v503 = vsub.f32 %v470, %v500
        %v504 = vmul.f32 %v502, %v502
        %v505 = vmul.f32 %v503, %v503
        %v506 = vadd.f32 %v504, %v505
        %507 = vadd.xlane.f32.xlu0 %v506
        %v508 = vpop.xlane.xlu0 %507
        %v510 = vrot.slane %v508, 2
        %v512 = vadd.f32 %v508, %v510
        %v513 = vrot.slane %v508, 4
        %v515 = vadd.f32 %v512, %v513
        %v516 = vrot.slane %v508, 6
        %v518 = vadd.f32 %v515, %v516
        %v519 = vmul.f32 %v518, 0.0009765625
        %v521 = vrot.slane %v519, 6
        %v523 = vrot.slane %v519, 4
        %v525 = vrot.slane %v519, 2
        %v527 = vsel %vm492, %v519, %v521
        %v528 = vsel %vm247, %v527, %v523
        %v529 = vsel %vm495, %v528, %v525
        %v530 = vadd.f32 %v529, 1e-05
        %v531 = vrsqrt.pop %v530
        %v532 = vmul.f32 %v531, %v530
        %v533 = vmul.f32 %v532, %v531
        %v534 = vmul.f32 0.5, %v533
        %v535 = vsub.f32 1.5, %v534
        %v536 = vmul.f32 %v531, %v535
        %vm537 = vweird.f32 %v530
        %vm538 = vweird.f32 %v531
        %vm539 = vmor %vm537, %vm538
        %v540 = vsel %vm539, %v531, %v536
        %542 = vset.pattern.permute.xlu0 0
        %543 = vperm.xlu0 %542, %v540
        %v544 = vpop.permute.xlu0 %543
        %v546 = vmul.f32 %v502, %v544
        %v547 = vmul.f32 %v503, %v544
        %vm548 = vcmp.ge.f32.partialorder %v546, 0.0
        %vm549 = vcmp.ge.f32.partialorder %v547, 0.0
        %v550 = vmul.f32 %v546, 0.01
        %v551 = vmul.f32 %v547, 0.01
        %v552 = vsel %vm548, %v546, %v550
        %v553 = vsel %vm549, %v547, %v551
        %554 = vst [vmem:[%s163] sm:$0xff] %v552
        %555 = vst [vmem:[%s163 + $0x8] sm:$0xff] %v553
        %s556 = sand.u32 %s93, 1
        %s557 = scalar_lea.sflag [#allocation3], %s556
        %s558 = sand.u32 %s93, 1
        %s559 = smul.addr %s558, 16
        %s560 = scalar_lea.vmem [#allocation2], %s559
        // Predicated region
        $region33: #{tpu_custom_call.1} parent=31 // pred_check
          %p561 = pneg %p103
        $region34: #{tpu_custom_call.1} parent=31 // pred_check_branch
          %563 = sbr.rel (%p561) target = $region36
        $region35: #{tpu_custom_call.1} parent=31 // pred_region
          %565 = vsyncadd %s557, 0
          %s566 = smul.addr %s17, 2
          %s567 = smul.addr %s566, 8
          %s568 = scalar_lea.hbm %s3, %s567
          %s570 = sshll.u32 %s560, 4
          %s571 = int_to_ptr.vmem [resolvable:$true] %s570
          %s572 = sshll.u32 %s568, 4
          %s573 = int_to_ptr.hbm [resolvable:$true] %s572
          %575 = dma.vmem_to_hbm [thread:$0]  %s571, 256, %s573, %s557
        $region36: #{tpu_custom_call.1} parent=31 // pred_fallthru
          _
      $region32: #{tpu_custom_call.1} parent=5 // pred_fallthru
        _
      %p576 = scmp.le.s32.totalorder 2, %s12
      // Predicated region
      $region37: #{tpu_custom_call.1} parent=5 // pred_check
        %p577 = pneg %p576
      $region38: #{tpu_custom_call.1} parent=5 // pred_check_branch
        %579 = sbr.rel (%p577) target = $region40
      $region39: #{tpu_custom_call.1} parent=5 // pred_region
        %s580 = ssub.s32 %s12, 2
        // Predicated region
        $region41: #{tpu_custom_call.1} parent=39 // pred_check
          %p581 = pneg %p109
        $region42: #{tpu_custom_call.1} parent=39 // pred_check_branch
          %583 = sbr.rel (%p581) target = $region44
        $region43: #{tpu_custom_call.1} parent=39 // pred_region
          %s584 = sand.u32 %s94, 1
          %s585 = scalar_lea.sflag [#allocation3], %s584
          %s586 = sand.u32 %s94, 1
          %s587 = smul.addr %s586, 16
          %s588 = scalar_lea.vmem [#allocation2], %s587
          %590 = dma.done %s585, 256
        $region44: #{tpu_custom_call.1} parent=39 // pred_fallthru
          _
      $region40: #{tpu_custom_call.1} parent=5 // pred_fallthru
        _
    $region6: #{tpu_custom_call.1} parent=1 // loop_footer
      %s16 = sadd.s32 1, %s12
    $region7: #{tpu_custom_call.1} parent=1 // loop_footer_branch
      %11 = sbr.rel target = $region3
    $region8: #{tpu_custom_call.1} parent=1 // loop_exit
      _
    %591 = vsyncpa [#allocation3], 1
    %s592 = scalar_lea.sflag [#allocation3], 1
    %593 = vsyncpa %s592, 1

</llo_original>
